<compile_context>
chip_gen: v7x
topology: tpu7x:2x2x1
jax: 0.10.0
libtpu: 0.0.40
codegen_flags: <defaults>
</compile_context>

<pallas_src>
import functools

import jax
import jax.numpy as jnp
from jax.experimental import pallas as pl
from jax.experimental.pallas import tpu as pltpu


def _round_up(n, m):
    return ((n + m - 1) // m) * m


def diag_gaussian_mean_kernel(x_ref, w_ref, b_ref, mean_ref):
    # (tb, In) @ (In, Out) on the MXU, f32 accumulation, + bias row broadcast (f32 VPU),
    # cast only at the store so v5e keeps a pure-f32 VALU path.
    acc = jnp.dot(x_ref[...], w_ref[...], preferred_element_type=jnp.float32)
    mean_ref[...] = (acc + b_ref[...].astype(jnp.float32)).astype(mean_ref.dtype)


def diag_gaussian(x, w_t, bias, logstd, *, tb_max=4096):
    """x: (B, In); w_t: (In, Out); bias, logstd: (1, Out).

    Returns (mean, std), each (B, Out) f32 — the parameters of FixedNormal.
    x / w_t may be bf16 for a ~2x HBM-traffic cut on v6e/v7x; accumulation is f32.
    """
    B, In = x.shape
    Out = w_t.shape[1]

    # Batch tile: big enough to amortize per-step overhead (~0.35 us), small enough
    # that large B still produces >=2 grid steps for the v7x megacore split.
    tb = min(tb_max, _round_up(pl.cdiv(B, 2), 8))
    grid = (pl.cdiv(B, tb),)

    # Weight/bias index_maps are constant across the grid: single-buffer them when
    # they are big enough for the extra buffer to matter (v7x 64 MiB VMEM).
    const_kwargs = {"pipeline_mode": pl.Buffered(1)} if In >= 2048 else {}

    mean = pl.pallas_call(
        diag_gaussian_mean_kernel,
        out_shape=jax.ShapeDtypeStruct((B, Out), jnp.float32),
        grid_spec=pltpu.PrefetchScalarGridSpec(
            num_scalar_prefetch=0,
            grid=grid,
            in_specs=[
                pl.BlockSpec((tb, In), lambda i: (i, 0)),               # batch-tiled x
                pl.BlockSpec((In, Out), lambda i: (0, 0), **const_kwargs),  # resident weight
                pl.BlockSpec((1, Out), lambda i: (0, 0), **const_kwargs),   # resident bias row
            ],
            out_specs=pl.BlockSpec((tb, Out), lambda i: (i, 0)),
        ),
        compiler_params=pltpu.CompilerParams(
            # Batch tiles are independent → megacore-shardable on v7x; harmless elsewhere.
            dimension_semantics=("parallel",),
        ),
    )(x, w_t, bias)

    # action_logstd = AddBias(zeros) == logstd broadcast; std = exp(logstd).
    # Parameter-only → compute once in the wrapper instead of in the kernel.
    std = jnp.broadcast_to(jnp.exp(logstd.astype(jnp.float32)), (B, Out))
    return mean, std


def orthogonal_init(key, shape, gain):
    """Deterministic equivalent of nn.init.orthogonal_ for a 2-D weight."""
    rows, cols = shape
    n = max(rows, cols)
    a = jax.random.normal(key, (n, min(rows, cols)), dtype=jnp.float32)
    q, r = jnp.linalg.qr(a)
    q = q * jnp.sign(jnp.diagonal(r))            # make decomposition unique
    q = q.T if rows < cols else q
    return gain * q[:rows, :cols]


if __name__ == "__main__":
    num_inputs, num_outputs, batch = 32, 8, 8
    gain = 0.01

    key = jax.random.PRNGKey(0)
    k_w, k_x = jax.random.split(key)

    # Parameters (deterministic, matching __init__):
    #   fc_mean.weight: (num_outputs, num_inputs) orthogonal * gain
    #   fc_mean.bias:   (num_outputs,) zeros
    #   logstd bias:    (num_outputs,) zeros
    W = orthogonal_init(k_w, (num_outputs, num_inputs), gain)   # (Out, In)
    w_t = jnp.asarray(W).T                                      # (In, Out) for kernel
    bias = jnp.zeros((1, num_outputs), dtype=jnp.float32)
    logstd = jnp.zeros((1, num_outputs), dtype=jnp.float32)

    x = jax.random.normal(k_x, (batch, num_inputs), dtype=jnp.float32)

    mean, std = diag_gaussian(x, w_t, bias, logstd)
    jax.block_until_ready((mean, std))

    # Reference check in plain JAX.
    ref_mean = x @ w_t + bias
    ref_std = jnp.exp(jnp.broadcast_to(logstd, ref_mean.shape))
    assert mean.shape == (batch, num_outputs) and std.shape == (batch, num_outputs)
    assert jnp.allclose(mean, ref_mean, atol=1e-5), "mean mismatch"
    assert jnp.allclose(std, ref_std, atol=1e-6), "std mismatch"

    # TODO(synk): FixedNormal's log_probs/entropy/mode are distribution methods over
    # (mean, std); they are trivially expressible in JAX outside the kernel (and could
    # be fused into this pallas_call if actions are available, to amortize the launch).

    print("KERNEL_OK")
</pallas_src>

<mosaic_0001>
module attributes {stable_mosaic.version = 11 : i64} {
  func.func @diag_gaussian_mean_kernel(%arg0: i32, %arg1: memref<8x32xf32, #tpu.memory_space<vmem>>, %arg2: memref<32x8xf32, #tpu.memory_space<vmem>>, %arg3: memref<1x8xf32, #tpu.memory_space<vmem>>, %arg4: memref<8x8xf32, #tpu.memory_space<vmem>>) attributes {dimension_semantics = [#tpu.dimension_semantics<parallel>], iteration_bounds = array<i64: 1>, scalar_prefetch = 0 : i64, scratch_operands = 0 : i64, tpu.core_type = #tpu.core_type<tc>, window_params = [{transform_indices = @transform_0, window_bounds = array<i64: 8, 32>}, {pipeline_mode = #tpu.pipeline_mode<synchronous>, transform_indices = @transform_1, window_bounds = array<i64: 32, 8>}, {pipeline_mode = #tpu.pipeline_mode<synchronous>, transform_indices = @transform_2, window_bounds = array<i64: 1, 8>}, {transform_indices = @transform_3, window_bounds = array<i64: 8, 8>}]} {
    %c0 = arith.constant 0 : index
    %c0_0 = arith.constant 0 : index
    %0 = vector.load %arg1[%c0, %c0_0] : memref<8x32xf32, #tpu.memory_space<vmem>>, vector<8x32xf32>
    %c0_1 = arith.constant 0 : index
    %c0_2 = arith.constant 0 : index
    %1 = vector.load %arg2[%c0_1, %c0_2] : memref<32x8xf32, #tpu.memory_space<vmem>>, vector<32x8xf32>
    %cst = arith.constant dense<0.000000e+00> : vector<8x8xf32>
    %2 = tpu.matmul %0, %1, %cst {dimension_numbers = #tpu.dot_dimension_numbers<[1], [0], [0], [1], [0, 0, 1, 1], [], []>} : vector<8x32xf32>, vector<32x8xf32>, vector<8x8xf32> -> vector<8x8xf32>
    %c0_3 = arith.constant 0 : index
    %c0_4 = arith.constant 0 : index
    %3 = vector.load %arg3[%c0_3, %c0_4] : memref<1x8xf32, #tpu.memory_space<vmem>>, vector<1x8xf32>
    %4 = vector.broadcast %3 : vector<1x8xf32> to vector<8x8xf32>
    %5 = arith.addf %2, %4 : vector<8x8xf32>
    %c0_5 = arith.constant 0 : index
    %c0_6 = arith.constant 0 : index
    %6 = vector.load %arg4[%c0_5, %c0_6] : memref<8x8xf32, #tpu.memory_space<vmem>>, vector<8x8xf32>
    tpu.vector_store %arg4[%c0_5, %c0_6], %5 {strides = array<i32>} : memref<8x8xf32, #tpu.memory_space<vmem>>, vector<8x8xf32>,
    return
  }
  func.func @transform_0(%arg0: i32) -> (i32, i32) {
    %c0_i32 = arith.constant 0 : i32
    %c0_i32_0 = arith.constant 0 : i32
    return %arg0, %c0_i32 : i32, i32
  }
  func.func @transform_1(%arg0: i32) -> (i32, i32) {
    %c0_i32 = arith.constant 0 : i32
    %c0_i32_0 = arith.constant 0 : i32
    %c0_i32_1 = arith.constant 0 : i32
    return %c0_i32, %c0_i32_0 : i32, i32
  }
  func.func @transform_2(%arg0: i32) -> (i32, i32) {
    %c0_i32 = arith.constant 0 : i32
    %c0_i32_0 = arith.constant 0 : i32
    %c0_i32_1 = arith.constant 0 : i32
    return %c0_i32, %c0_i32_0 : i32, i32
  }
  func.func @transform_3(%arg0: i32) -> (i32, i32) {
    %c0_i32 = arith.constant 0 : i32
    %c0_i32_0 = arith.constant 0 : i32
    return %arg0, %c0_i32 : i32, i32
  }
}

</mosaic_0001>

<llo_original>
// kernel: tpu_custom_call.1
$region0: #{tpu_custom_call.1}
  #allocation0 [shape = 'u32[]', space=smem, size = 0x4, offset = 0x4, fixed_abs, tag = 'smem constant byte address 0x4 - core index']
  #allocation1 [shape = 'u32[144,128]{1,0:T(1,128)}', space=vmem, size = 0x12000, scoped, tag = 'internal scratch']
  %s0 = inlined_call_operand.vmem [shape: f32[8,32], index: 0, kind: input, shape index: {}]
  %s1 = inlined_call_operand.vmem [shape: f32[32,8], index: 1, kind: input, shape index: {}]
  %s2 = inlined_call_operand.vmem [shape: f32[1,8], index: 2, kind: input, shape index: {}]
  %s3 = inlined_call_operand.hbm [shape: f32[8,8], index: 3, kind: output, shape index: {}]
  %s4 = sld [smem:[#allocation0]]
  $region22: #{tpu_custom_call.1} parent=0
    _
  %s6 = ssub.s32 1, %s4
  %s7 = scalar_select 0, %s6, %s4
  $region1: #{tpu_custom_call.1} parent=0
    #allocation2 [shape = 'u8[4096]{0}', space=vmem, size = 0x1000, scoped, tag = 'output window, operand 0, single buffered']
    #allocation3 [shape = 's32[1]{0}', space=sflag, size = 0x4, scoped, tag = 'scoped memory for tpu_custom_call.1']
    %8 = vsyncpa [#allocation3], 0
    // Predicated region
    $region2: #{tpu_custom_call.1} parent=1 // pred_check
      _
    $region3: #{tpu_custom_call.1} parent=1 // pred_check_branch
      %10 = sbr.rel (0) target = $region5
    $region4: #{tpu_custom_call.1} parent=1 // pred_region
      _
    $region5: #{tpu_custom_call.1} parent=1 // pred_fallthru
      _
    // Predicated region
    $region6: #{tpu_custom_call.1} parent=1 // pred_check
      _
    $region7: #{tpu_custom_call.1} parent=1 // pred_check_branch
      %12 = sbr.rel (0) target = $region9
    $region8: #{tpu_custom_call.1} parent=1 // pred_region
      _
    $region9: #{tpu_custom_call.1} parent=1 // pred_fallthru
      _
    // Predicated region
    $region10: #{tpu_custom_call.1} parent=1 // pred_check
      _
    $region11: #{tpu_custom_call.1} parent=1 // pred_check_branch
      %14 = sbr.rel (0) target = $region13
    $region12: #{tpu_custom_call.1} parent=1 // pred_region
      _
    $region13: #{tpu_custom_call.1} parent=1 // pred_fallthru
      _
    %v15 = vld [vmem:[%s0] sm:$0xff]
    %v16 = vld [vmem:[%s1] sm:$0xff]
    %v17 = vld [vmem:[%s1 + $0x8] sm:$0xff]
    %v18 = vld [vmem:[%s1 + $0x10] sm:$0xff]
    %v19 = vld [vmem:[%s1 + $0x18] sm:$0xff]
    %v20 = vld [vmem:[%s2] sm:$0x1]
    %v22 = vlaneseq
    %v23 = vshrl.u32 %v22, 7
    %v24 = vsub.s32 0, %v23
    %v25 = vrot.slane %v20, %v24
    %vm27 = vcmask 261120
    %v29 = vsel %vm27, %v15, 0
    %31 = vmatprep.subr.mxu0 0.0
    %32 = vmatpush1.msra.mxu0 %v16
    %33 = vmatprep.subr.mxu0 0.0
    %34 = vmatpush1.msra.mxu0 %v17
    %35 = vmatprep.subr.mxu0 0.0
    %36 = vmatpush1.msra.mxu0 %v18
    %37 = vmatprep.subr.mxu0 0.0
    %38 = vmatpush1.msra.mxu0 %v19
    %39 = vmatprep.subr.mxu0 0.0
    %40 = vmatpush1.msra.mxu0 0.0
    %41 = vmatprep.subr.mxu0 0.0
    %42 = vmatpush1.msra.mxu0 0.0
    %43 = vmatprep.subr.mxu0 0.0
    %44 = vmatpush1.msra.mxu0 0.0
    %45 = vmatprep.subr.mxu0 0.0
    %46 = vmatpush1.msra.mxu0 0.0
    %47 = vmatprep.subr.mxu0 0.0
    %48 = vmatpush1.msra.mxu0 0.0
    %49 = vmatprep.subr.mxu0 0.0
    %50 = vmatpush1.msra.mxu0 0.0
    %51 = vmatprep.subr.mxu0 0.0
    %52 = vmatpush1.msra.mxu0 0.0
    %53 = vmatprep.subr.mxu0 0.0
    %54 = vmatpush1.msra.mxu0 0.0
    %55 = vmatprep.subr.mxu0 0.0
    %56 = vmatpush1.msra.mxu0 0.0
    %57 = vmatprep.subr.mxu0 0.0
    %58 = vmatpush1.msra.mxu0 0.0
    %59 = vmatprep.subr.mxu0 0.0
    %60 = vmatpush1.msra.mxu0 0.0
    %61 = vmatprep.subr.mxu0 0.0
    %62 = vmatpush1.msra.mxu0 0.0
    %63 = vmatprep.subr.mxu0 0.0
    %64 = vmatpush1.msra.mxu0 0.0
    %65 = vmatprep.subr.mxu0 0.0
    %66 = vmatpush1.msra.mxu0 0.0
    %67 = vmatprep.subr.mxu0 0.0
    %68 = vmatpush1.msra.mxu0 0.0
    %69 = vmatprep.subr.mxu0 0.0
    %70 = vmatpush1.msra.mxu0 0.0
    %71 = vmatprep.subr.mxu0 0.0
    %72 = vmatpush1.msra.mxu0 0.0
    %73 = vmatprep.subr.mxu0 0.0
    %74 = vmatpush1.msra.mxu0 0.0
    %75 = vmatprep.subr.mxu0 0.0
    %76 = vmatpush1.msra.mxu0 0.0
    %77 = vmatprep.subr.mxu0 0.0
    %78 = vmatpush1.msra.mxu0 0.0
    %79 = vmatprep.subr.mxu0 0.0
    %80 = vmatpush1.msra.mxu0 0.0
    %81 = vmatprep.subr.mxu0 0.0
    %82 = vmatpush1.msra.mxu0 0.0
    %83 = vmatprep.subr.mxu0 0.0
    %84 = vmatpush1.msra.mxu0 0.0
    %85 = vmatprep.subr.mxu0 0.0
    %86 = vmatpush1.msra.mxu0 0.0
    %87 = vmatprep.subr.mxu0 0.0
    %88 = vmatpush1.msra.mxu0 0.0
    %89 = vmatprep.subr.mxu0 0.0
    %90 = vmatpush1.msra.mxu0 0.0
    %91 = vmatprep.subr.mxu0 0.0
    %92 = vmatpush1.msra.mxu0 0.0
    %93 = vmatprep.subr.mxu0 0.0
    %94 = vmatpush1.msra.mxu0 0.0
    %95 = vmatprep.mubr.f32.mxu0 0.0
    %96 = vmatmul.mubr.f32.gmra.mrb[0].mxu0 %v29
    %v97 = vpop.f32.mrb[0].mxu0
    %v98 = vadd.f32 %v25, %v97
    %v99 = vpop.f32.mrb[0].mxu0
    %100 = vdwg.mxu0
    %vm101 = vcmask 64512
    %102 = vst.msk [vmem:[#allocation2] sm:$0xff] %vm101, %v98
    // Predicated region
    $region14: #{tpu_custom_call.1} parent=1 // pred_check
      _
    $region15: #{tpu_custom_call.1} parent=1 // pred_check_branch
      %104 = sbr.rel (0) target = $region17
    $region16: #{tpu_custom_call.1} parent=1 // pred_region
      %s106 = ssub.s32 128, 128
      %107 = vsyncadd [#allocation3], %s106
      %s109 = sshll.u32 [#allocation2], 4
      %s110 = int_to_ptr.vmem [resolvable:$true] %s109
      %112 = dma.vmem_to_hbm [thread:$0]  %s110, 128, %s3, [#allocation3]
    $region17: #{tpu_custom_call.1} parent=1 // pred_fallthru
      _
    // Predicated region
    $region18: #{tpu_custom_call.1} parent=1 // pred_check
      _
    $region19: #{tpu_custom_call.1} parent=1 // pred_check_branch
      %114 = sbr.rel (0) target = $region21
    $region20: #{tpu_custom_call.1} parent=1 // pred_region
      %115 = dma.done [#allocation3], 128
    $region21: #{tpu_custom_call.1} parent=1 // pred_fallthru
      _
    %116 = vsyncpa [#allocation3], 1

</llo_original>
